<compile_context>
chip_gen: v5e
topology: v5e:2x2
jax: 0.10.0
libtpu: 0.0.40
codegen_flags: <defaults>
</compile_context>

<pallas_src>
import functools
import math

import jax
import jax.numpy as jnp
from jax.experimental import pallas as pl
from jax.experimental.pallas import tpu as pltpu


_MAX_TILE_N = 1024
_MAX_TILE_C = 2048
_DEFAULT_VMEM_CAPACITY = 64 * 1024 * 1024  # conservative fallback (v7x per-TC)


def _round_up(x, m):
    return ((x + m - 1) // m) * m


def _vmem_capacity_bytes():
    try:
        return int(pltpu.get_tpu_info().vmem_capacity_bytes)
    except Exception:
        return _DEFAULT_VMEM_CAPACITY


def _block_bytes_target(vmem_capacity):
    # v5e/v6e: 128 MiB VMEM -> ~8 MiB f32 blocks; v7x: 64 MiB -> ~4 MiB.
    return (8 << 20) if vmem_capacity >= (100 << 20) else (4 << 20)


def _choose_tiles(N, C, block_bytes, min_blocks=4):
    """Bytes-based 2-D tile selection (no padding; Pallas masks edge blocks).

    tile_n is a multiple of 8 and tile_c a multiple of 128 (lane-dense
    stores). The grid is split until it has >= min_blocks blocks when the
    shape allows, so both v7x TensorCores get work and pipelining survives.
    """
    tile_c = min(_round_up(max(C, 1), 128), _MAX_TILE_C)
    rows = block_bytes // (tile_c * 4)
    rows = max(8, (rows // 8) * 8)
    tile_n = min(rows, _MAX_TILE_N, _round_up(max(N, 1), 8))

    def n_blocks(tn, tc):
        return pl.cdiv(N, tn) * pl.cdiv(C, tc)

    while n_blocks(tile_n, tile_c) < min_blocks:
        if tile_n > 8 and pl.cdiv(N, tile_n) < pl.cdiv(N, 8):
            tile_n = max(8, _round_up(tile_n // 2, 8))
        elif tile_c > 128 and pl.cdiv(C, tile_c) < pl.cdiv(C, 128):
            tile_c = max(128, _round_up(tile_c // 2, 128))
        else:
            break
    return tile_n, tile_c


def _compiler_params(stream_bytes_per_block, vmem_capacity):
    # 2x for double buffering + Mosaic-internal headroom; never below 16 MiB
    # and never above 3/4 of physical VMEM.
    limit = 2 * stream_bytes_per_block + (8 << 20)
    limit = max(limit, 16 << 20)
    limit = min(limit, vmem_capacity * 3 // 4)
    return pltpu.CompilerParams(
        dimension_semantics=("parallel", "parallel"),
        vmem_limit_bytes=int(limit))


def _margin_consts(margin):
    return (math.cos(margin), math.sin(margin),
            math.cos(math.pi - margin), math.sin(math.pi - margin) * margin)


def _aam_math(cosine, cos_m, sin_m, th, mm, easy_margin):
    # Matches the PyTorch spec: cosine itself is clamped to +/-(1 - 1e-7)
    # before everything else (also keeps sqrt from NaN-ing on garbage lanes
    # in masked edge blocks).
    eps = 1e-07
    cosine = jnp.clip(cosine, -1.0 + eps, 1.0 - eps)
    sine = jnp.sqrt(1.0 - cosine * cosine)
    phi = cosine * cos_m - sine * sin_m
    if easy_margin:
        phi = jnp.where(cosine > 0.0, phi, cosine)
    else:
        phi = jnp.where(cosine > th, phi, cosine - mm)
    return cosine, phi


def _aam_dense_kernel(outputs_ref, targets_ref, out_ref, *, cos_m, sin_m, th,
                      mm, scale, easy_margin):
    cosine = outputs_ref[...].astype(jnp.float32)
    targets = targets_ref[...].astype(jnp.float32)
    cosine, phi = _aam_math(cosine, cos_m, sin_m, th, mm, easy_margin)
    result = cosine + targets * (phi - cosine)      # == t*phi + (1-t)*cosine
    out_ref[...] = (scale * result).astype(out_ref.dtype)


def _aam_labels_kernel(labels_ref, outputs_ref, out_ref, *, cos_m, sin_m, th,
                       mm, scale, easy_margin, tile_c):
    cosine = outputs_ref[...].astype(jnp.float32)
    cosine, phi = _aam_math(cosine, cos_m, sin_m, th, mm, easy_margin)
    col0 = pl.program_id(1) * tile_c
    col_ids = jax.lax.broadcasted_iota(jnp.int32, cosine.shape, 1) + col0
    is_target = col_ids == labels_ref[...]          # (tile_n, 1) broadcast
    result = jnp.where(is_target, phi, cosine)
    out_ref[...] = (scale * result).astype(out_ref.dtype)


def additive_angular_margin(outputs, targets, *, margin=0.0, scale=1.0,
                            easy_margin=False, out_dtype=jnp.float32):
    """General AAM forward matching the PyTorch module: dense targets [N, C].

    `targets` may be f32 / bf16 / int8 — it is upcast in-kernel. `out_dtype`
    defaults to float32 to match the reference `.float()` semantics.
    """
    assert outputs.shape == targets.shape
    N, C = outputs.shape
    vmem_cap = _vmem_capacity_bytes()
    tile_n, tile_c = _choose_tiles(N, C, _block_bytes_target(vmem_cap))
    cos_m, sin_m, th, mm = _margin_consts(margin)

    kernel = functools.partial(
        _aam_dense_kernel, cos_m=cos_m, sin_m=sin_m, th=th, mm=mm,
        scale=scale, easy_margin=easy_margin)

    grid = (pl.cdiv(N, tile_n), pl.cdiv(C, tile_c))
    stream_bytes = tile_n * tile_c * (
        outputs.dtype.itemsize + targets.dtype.itemsize
        + jnp.dtype(out_dtype).itemsize)

    return pl.pallas_call(
        kernel,
        out_shape=jax.ShapeDtypeStruct((N, C), out_dtype),
        grid_spec=pltpu.PrefetchScalarGridSpec(
            num_scalar_prefetch=0,
            grid=grid,
            in_specs=[
                pl.BlockSpec((tile_n, tile_c), lambda i, j: (i, j)),
                pl.BlockSpec((tile_n, tile_c), lambda i, j: (i, j)),
            ],
            out_specs=pl.BlockSpec((tile_n, tile_c), lambda i, j: (i, j)),
        ),
        compiler_params=_compiler_params(stream_bytes, vmem_cap),
    )(outputs, targets)


def additive_angular_margin_from_labels(outputs, labels, *, margin=0.0,
                                        scale=1.0, easy_margin=False,
                                        out_dtype=jnp.float32):
    """Fast path for one-hot targets: pass integer labels [N]; the one-hot
    mask is built in-kernel, dropping a full [N, C] HBM stream.

    Edge blocks may read stale label rows; any spurious matches only affect
    rows/cols that the masked edge store discards.
    """
    N, C = outputs.shape
    assert labels.shape == (N,)
    vmem_cap = _vmem_capacity_bytes()
    tile_n, tile_c = _choose_tiles(N, C, _block_bytes_target(vmem_cap))
    cos_m, sin_m, th, mm = _margin_consts(margin)

    labels2d = labels.astype(jnp.int32).reshape(N, 1)

    kernel = functools.partial(
        _aam_labels_kernel, cos_m=cos_m, sin_m=sin_m, th=th, mm=mm,
        scale=scale, easy_margin=easy_margin, tile_c=tile_c)

    grid = (pl.cdiv(N, tile_n), pl.cdiv(C, tile_c))
    stream_bytes = tile_n * tile_c * (
        outputs.dtype.itemsize + jnp.dtype(out_dtype).itemsize) + tile_n * 4

    return pl.pallas_call(
        kernel,
        out_shape=jax.ShapeDtypeStruct((N, C), out_dtype),
        grid_spec=pltpu.PrefetchScalarGridSpec(
            num_scalar_prefetch=0,
            grid=grid,
            in_specs=[
                pl.BlockSpec((tile_n, 1), lambda i, j: (i, 0)),
                pl.BlockSpec((tile_n, tile_c), lambda i, j: (i, j)),
            ],
            out_specs=pl.BlockSpec((tile_n, tile_c), lambda i, j: (i, j)),
        ),
        compiler_params=_compiler_params(stream_bytes, vmem_cap),
    )(labels2d, outputs)


def _reference_aam(outputs, targets, margin, scale, easy_margin):
    cos_m, sin_m, th, mm = _margin_consts(margin)
    cosine = jnp.clip(outputs.astype(jnp.float32), -1 + 1e-07, 1 - 1e-07)
    sine = jnp.sqrt(1.0 - cosine ** 2)
    phi = cosine * cos_m - sine * sin_m
    if easy_margin:
        phi = jnp.where(cosine > 0, phi, cosine)
    else:
        phi = jnp.where(cosine > th, phi, cosine - mm)
    return scale * (targets * phi + (1.0 - targets) * cosine)


if __name__ == "__main__":
    key = jax.random.PRNGKey(0)
    k1, k2 = jax.random.split(key)

    # Deliberately non-aligned shapes: exercises masked partial edge blocks
    # in both dims and the >=4-block grid split.
    N, C = 10, 200
    outputs = jnp.tanh(jax.random.normal(k1, (N, C), dtype=jnp.float32))
    labels = jax.random.randint(k2, (N,), 0, C).astype(jnp.int32)
    targets = jax.nn.one_hot(labels, C, dtype=jnp.float32)

    margin, scale = 0.2, 30.0

    # Dense-targets path (matches the PyTorch module interface), both margins.
    for easy_margin in (False, True):
        ref = _reference_aam(outputs, targets, margin, scale, easy_margin)
        pred = additive_angular_margin(
            outputs, targets, margin=margin, scale=scale,
            easy_margin=easy_margin)
        pred = jax.block_until_ready(pred)
        assert pred.shape == (N, C) and pred.dtype == jnp.float32
        assert jnp.allclose(pred, ref, atol=1e-5, rtol=1e-5), "dense mismatch"

    # One-hot fast path (label indices, mask built in-kernel).
    ref = _reference_aam(outputs, targets, margin, scale, False)
    pred_lbl = additive_angular_margin_from_labels(
        outputs, labels, margin=margin, scale=scale, easy_margin=False)
    pred_lbl = jax.block_until_ready(pred_lbl)
    assert pred_lbl.shape == (N, C) and pred_lbl.dtype == jnp.float32
    assert jnp.allclose(pred_lbl, ref, atol=1e-5, rtol=1e-5), "labels mismatch"

    print("KERNEL_OK")
</pallas_src>

<mosaic_0001>
module attributes {stable_mosaic.version = 11 : i64} {
  func.func @_aam_dense_kernel(%arg0: i32, %arg1: i32, %arg2: memref<8x128xf32, #tpu.memory_space<vmem>>, %arg3: memref<8x128xf32, #tpu.memory_space<vmem>>, %arg4: memref<8x128xf32, #tpu.memory_space<vmem>>) attributes {dimension_semantics = [#tpu.dimension_semantics<parallel>, #tpu.dimension_semantics<parallel>], iteration_bounds = array<i64: 2, 2>, scalar_prefetch = 0 : i64, scratch_operands = 0 : i64, tpu.core_type = #tpu.core_type<tc>, window_params = [{transform_indices = @transform_0, window_bounds = array<i64: 8, 128>}, {transform_indices = @transform_1, window_bounds = array<i64: 8, 128>}, {transform_indices = @transform_2, window_bounds = array<i64: 8, 128>}]} {
    %c0 = arith.constant 0 : index
    %c0_0 = arith.constant 0 : index
    %0 = vector.load %arg2[%c0, %c0_0] : memref<8x128xf32, #tpu.memory_space<vmem>>, vector<8x128xf32>
    %c0_1 = arith.constant 0 : index
    %c0_2 = arith.constant 0 : index
    %1 = vector.load %arg3[%c0_1, %c0_2] : memref<8x128xf32, #tpu.memory_space<vmem>>, vector<8x128xf32>
    %cst = arith.constant -0.99999988 : f32
    %cst_3 = arith.constant 0.99999988 : f32
    %2 = vector.broadcast %cst : f32 to vector<8x128xf32>
    %3 = arith.maximumf %2, %0 : vector<8x128xf32>
    %4 = vector.broadcast %cst_3 : f32 to vector<8x128xf32>
    %5 = arith.minimumf %4, %3 : vector<8x128xf32>
    %6 = arith.mulf %5, %5 : vector<8x128xf32>
    %cst_4 = arith.constant 1.000000e+00 : f32
    %7 = vector.broadcast %cst_4 : f32 to vector<8x128xf32>
    %8 = arith.subf %7, %6 : vector<8x128xf32>
    %9 = math.sqrt %8 : vector<8x128xf32>
    %cst_5 = arith.constant 0.980066597 : f32
    %10 = vector.broadcast %cst_5 : f32 to vector<8x128xf32>
    %11 = arith.mulf %5, %10 : vector<8x128xf32>
    %cst_6 = arith.constant 0.198669329 : f32
    %12 = vector.broadcast %cst_6 : f32 to vector<8x128xf32>
    %13 = arith.mulf %9, %12 : vector<8x128xf32>
    %14 = arith.subf %11, %13 : vector<8x128xf32>
    %cst_7 = arith.constant -0.980066597 : f32
    %15 = vector.broadcast %cst_7 : f32 to vector<8x128xf32>
    %16 = arith.cmpf ogt, %5, %15 : vector<8x128xf32>
    %cst_8 = arith.constant 0.0397338644 : f32
    %17 = vector.broadcast %cst_8 : f32 to vector<8x128xf32>
    %18 = arith.subf %5, %17 : vector<8x128xf32>
    %19 = arith.select %16, %14, %18 : vector<8x128xi1>, vector<8x128xf32>
    %20 = arith.subf %19, %5 : vector<8x128xf32>
    %21 = arith.mulf %1, %20 : vector<8x128xf32>
    %22 = arith.addf %5, %21 : vector<8x128xf32>
    %cst_9 = arith.constant 3.000000e+01 : f32
    %23 = vector.broadcast %cst_9 : f32 to vector<8x128xf32>
    %24 = arith.mulf %23, %22 : vector<8x128xf32>
    %c0_10 = arith.constant 0 : index
    %c0_11 = arith.constant 0 : index
    %25 = vector.load %arg4[%c0_10, %c0_11] : memref<8x128xf32, #tpu.memory_space<vmem>>, vector<8x128xf32>
    tpu.vector_store %arg4[%c0_10, %c0_11], %24 {strides = array<i32>} : memref<8x128xf32, #tpu.memory_space<vmem>>, vector<8x128xf32>,
    return
  }
  func.func @transform_0(%arg0: i32, %arg1: i32) -> (i32, i32) {
    %c0_i32 = arith.constant 0 : i32
    return %arg0, %arg1 : i32, i32
  }
  func.func @transform_1(%arg0: i32, %arg1: i32) -> (i32, i32) {
    %c0_i32 = arith.constant 0 : i32
    return %arg0, %arg1 : i32, i32
  }
  func.func @transform_2(%arg0: i32, %arg1: i32) -> (i32, i32) {
    %c0_i32 = arith.constant 0 : i32
    return %arg0, %arg1 : i32, i32
  }
}

</mosaic_0001>

<llo_original>
// kernel: tpu_custom_call.1
$region0: #{tpu_custom_call.1}
  #allocation0 [shape = 'u32[]', space=smem, size = 0x4, offset = 0x4, fixed_abs, tag = 'smem constant byte address 0x4 - core index']
  #allocation1 [shape = 'u32[72,128]{1,0:T(1,128)}', space=vmem, size = 0x9000, scoped, tag = 'internal scratch']
  %s0 = inlined_call_operand.hbm [shape: f32[10,200], index: 0, kind: input, shape index: {}]
  %s1 = inlined_call_operand.hbm [shape: f32[10,200], index: 1, kind: input, shape index: {}]
  %s2 = inlined_call_operand.hbm [shape: f32[10,200], index: 2, kind: output, shape index: {}]
  %s3 = sld [smem:[#allocation0]]
  $region49: #{tpu_custom_call.1} parent=0
    _
  %s5 = ssub.s32 1, %s3
  %s6 = scalar_select 0, %s5, %s3
  $region1: #{tpu_custom_call.1} parent=0
    #allocation2 [shape = 'u8[8192]{0}', space=vmem, size = 0x2000, scoped, tag = 'input window, operand 0']
    #allocation3 [shape = 's32[2]{0}', space=sflag, size = 0x8, scoped, tag = 'scoped memory for tpu_custom_call.1']
    #allocation4 [shape = 's32[2]{0}', space=sflag, size = 0x8, scoped, tag = 'scoped memory for tpu_custom_call.1']
    #allocation5 [shape = 'u8[8192]{0}', space=vmem, size = 0x2000, scoped, tag = 'input window, operand 1']
    #allocation6 [shape = 's32[2]{0}', space=sflag, size = 0x8, scoped, tag = 'scoped memory for tpu_custom_call.1']
    #allocation7 [shape = 'u8[8192]{0}', space=vmem, size = 0x2000, scoped, tag = 'output window, operand 0']
    %7 = vsyncpa [#allocation3], 0
    %s8 = scalar_lea.sflag [#allocation3], 1
    %9 = vsyncpa %s8, 0
    %10 = vsyncpa [#allocation6], 0
    %s11 = scalar_lea.sflag [#allocation6], 1
    %12 = vsyncpa %s11, 0
    %13 = vsyncpa [#allocation4], 0
    %s14 = scalar_lea.sflag [#allocation4], 1
    %15 = vsyncpa %s14, 0
    loop: start=0, step=1, limit=6
    $region2: #{tpu_custom_call.1} parent=1 // loop_pre_header
      _
    $region3: #{tpu_custom_call.1} parent=1 // loop_header
      %s17 = sphi 0, %s21
      %p18 = scmp.ge.s32.totalorder %s17, 6
      %s24 = sphi 0, %s36
      %s25 = sphi 0, %s32
      %s26 = sphi 0, %s24
      %s27 = sphi 0, %s25
      %s28 = sphi 0, %s26
      %s29 = sphi 0, %s27
      %s41 = sphi 0, %s43
      %s44 = sphi 0, %s41
      %s45 = sphi 0, %s44
      %s61 = sphi 0, %s45
      %s69 = sphi 0, %s71
      %s72 = sphi 0, %s69
      %s73 = sphi 0, %s72
      %s89 = sphi 0, %s73
      %s97 = sphi 0, %s99
      %s100 = sphi 0, %s97
      %s101 = sphi 0, %s100
      %s117 = sphi 0, %s101
    $region4: #{tpu_custom_call.1} parent=1 // loop_header_branch
      %20 = sbr.rel (%p18) target = $region8
    $region5: #{tpu_custom_call.1} parent=1 // loop_body
      %s22 = ssub.s32 %s17, 1
      %s23 = ssub.s32 %s17, 2
      %s30 = sadd.s32 1, %s25
      %p31 = scmp.ge.s32.totalorder %s30, 2
      %s32 = scalar_select %p31, 0, %s30
      %s33 = sadd.s32 1, %s24
      %s34 = scalar_select %p31, %s33, %s24
      %p35 = scmp.ge.s32.totalorder %s34, 2
      %s36 = scalar_select %p35, 0, %s34
      %s37 = ssub.s32 %s24, %s36
      %s38 = ssub.s32 %s25, %s32
      %s39 = sor.u32 %s37, %s38
      %p40 = scmp.eq.s32.totalorder %s39, 0
      %s42 = sadd.s32 %s41, 1
      %s43 = scalar_select %p40, %s41, %s42
      %p46 = pneg %p40
      %p47 = scmp.eq.s32.totalorder %s17, 3
      %p48 = por %p46, %p47
      %p49 = scmp.ne.s32.totalorder %s41, %s44
      %p50 = scmp.eq.s32.totalorder %s17, 0
      %p51 = por %p49, %p50
      %p52 = scmp.ne.s32.totalorder %s41, %s44
      %p53 = scmp.eq.s32.totalorder %s22, 3
      %p54 = por %p52, %p53
      %p55 = scmp.ne.s32.totalorder %s44, %s45
      %p56 = scmp.eq.s32.totalorder %s22, 0
      %p57 = por %p55, %p56
      %p58 = scmp.ne.s32.totalorder %s44, %s45
      %p59 = scmp.eq.s32.totalorder %s23, 3
      %p60 = por %p58, %p59
      %p62 = scmp.ne.s32.totalorder %s45, %s61
      %p63 = scmp.eq.s32.totalorder %s23, 0
      %p64 = por %p62, %p63
      %s65 = ssub.s32 %s24, %s36
      %s66 = ssub.s32 %s25, %s32
      %s67 = sor.u32 %s65, %s66
      %p68 = scmp.eq.s32.totalorder %s67, 0
      %s70 = sadd.s32 %s69, 1
      %s71 = scalar_select %p68, %s69, %s70
      %p74 = pneg %p68
      %p75 = scmp.eq.s32.totalorder %s17, 3
      %p76 = por %p74, %p75
      %p77 = scmp.ne.s32.totalorder %s69, %s72
      %p78 = scmp.eq.s32.totalorder %s17, 0
      %p79 = por %p77, %p78
      %p80 = scmp.ne.s32.totalorder %s69, %s72
      %p81 = scmp.eq.s32.totalorder %s22, 3
      %p82 = por %p80, %p81
      %p83 = scmp.ne.s32.totalorder %s72, %s73
      %p84 = scmp.eq.s32.totalorder %s22, 0
      %p85 = por %p83, %p84
      %p86 = scmp.ne.s32.totalorder %s72, %s73
      %p87 = scmp.eq.s32.totalorder %s23, 3
      %p88 = por %p86, %p87
      %p90 = scmp.ne.s32.totalorder %s73, %s89
      %p91 = scmp.eq.s32.totalorder %s23, 0
      %p92 = por %p90, %p91
      %s93 = ssub.s32 %s24, %s36
      %s94 = ssub.s32 %s25, %s32
      %s95 = sor.u32 %s93, %s94
      %p96 = scmp.eq.s32.totalorder %s95, 0
      %s98 = sadd.s32 %s97, 1
      %s99 = scalar_select %p96, %s97, %s98
      %p102 = pneg %p96
      %p103 = scmp.eq.s32.totalorder %s17, 3
      %p104 = por %p102, %p103
      %p105 = scmp.ne.s32.totalorder %s97, %s100
      %p106 = scmp.eq.s32.totalorder %s17, 0
      %p107 = por %p105, %p106
      %p108 = scmp.ne.s32.totalorder %s97, %s100
      %p109 = scmp.eq.s32.totalorder %s22, 3
      %p110 = por %p108, %p109
      %p111 = scmp.ne.s32.totalorder %s100, %s101
      %p112 = scmp.eq.s32.totalorder %s22, 0
      %p113 = por %p111, %p112
      %p114 = scmp.ne.s32.totalorder %s100, %s101
      %p115 = scmp.eq.s32.totalorder %s23, 3
      %p116 = por %p114, %p115
      %p118 = scmp.ne.s32.totalorder %s101, %s117
      %p119 = scmp.eq.s32.totalorder %s23, 0
      %p120 = por %p118, %p119
      %p121 = scmp.le.s32.totalorder 1, %s17
      %p122 = scmp.lt.s32.totalorder %s17, 5
      %p123 = pnand %p121, %p122
      %p124 = pneg %p123
      // Predicated region
      $region9: #{tpu_custom_call.1} parent=5 // pred_check
        _
      $region10: #{tpu_custom_call.1} parent=5 // pred_check_branch
        %126 = sbr.rel (%p123) target = $region12
      $region11: #{tpu_custom_call.1} parent=5 // pred_region
        %s127 = ssub.s32 %s17, 1
      $region12: #{tpu_custom_call.1} parent=5 // pred_fallthru
        _
      %p128 = scmp.lt.s32.totalorder %s17, 4
      // Predicated region
      $region13: #{tpu_custom_call.1} parent=5 // pred_check
        %p129 = pneg %p128
      $region14: #{tpu_custom_call.1} parent=5 // pred_check_branch
        %131 = sbr.rel (%p129) target = $region16
      $region15: #{tpu_custom_call.1} parent=5 // pred_region
        // Predicated region
        $region17: #{tpu_custom_call.1} parent=15 // pred_check
          %p132 = pneg %p51
        $region18: #{tpu_custom_call.1} parent=15 // pred_check_branch
          %134 = sbr.rel (%p132) target = $region20
        $region19: #{tpu_custom_call.1} parent=15 // pred_region
          %s135 = sand.u32 %s41, 1
          %s136 = scalar_lea.sflag [#allocation3], %s135
          %s137 = sand.u32 %s41, 1
          %s138 = smul.addr %s137, 8
          %s139 = scalar_lea.vmem [#allocation2], %s138
          %141 = vsyncadd %s136, 0
          %s142 = smul.addr %s24, 2
          %s143 = sadd.s32 %s25, %s142
          %s144 = smul.addr %s143, 8
          %s145 = scalar_lea.hbm %s0, %s144
          %s147 = sshll.u32 %s145, 4
          %s148 = int_to_ptr.hbm [resolvable:$true] %s147
          %s149 = sshll.u32 %s139, 4
          %s150 = int_to_ptr.vmem [resolvable:$true] %s149
          %152 = dma.hbm_to_vmem [thread:$0]  %s148, 128, %s150, %s136
        $region20: #{tpu_custom_call.1} parent=15 // pred_fallthru
          _
        // Predicated region
        $region21: #{tpu_custom_call.1} parent=15 // pred_check
          %p153 = pneg %p79
        $region22: #{tpu_custom_call.1} parent=15 // pred_check_branch
          %155 = sbr.rel (%p153) target = $region24
        $region23: #{tpu_custom_call.1} parent=15 // pred_region
          %s156 = sand.u32 %s69, 1
          %s157 = scalar_lea.sflag [#allocation6], %s156
          %s158 = sand.u32 %s69, 1
          %s159 = smul.addr %s158, 8
          %s160 = scalar_lea.vmem [#allocation5], %s159
          %162 = vsyncadd %s157, 0
          %s163 = smul.addr %s24, 2
          %s164 = sadd.s32 %s25, %s163
          %s165 = smul.addr %s164, 8
          %s166 = scalar_lea.hbm %s1, %s165
          %s168 = sshll.u32 %s166, 4
          %s169 = int_to_ptr.hbm [resolvable:$true] %s168
          %s170 = sshll.u32 %s160, 4
          %s171 = int_to_ptr.vmem [resolvable:$true] %s170
          %173 = dma.hbm_to_vmem [thread:$0]  %s169, 128, %s171, %s157
        $region24: #{tpu_custom_call.1} parent=15 // pred_fallthru
          _
      $region16: #{tpu_custom_call.1} parent=5 // pred_fallthru
        _
      %p174 = scmp.le.s32.totalorder 1, %s17
      %p175 = scmp.lt.s32.totalorder %s17, 5
      %p176 = pnand %p174, %p175
      %p177 = pneg %p176
      // Predicated region
      $region25: #{tpu_custom_call.1} parent=5 // pred_check
        _
      $region26: #{tpu_custom_call.1} parent=5 // pred_check_branch
        %179 = sbr.rel (%p176) target = $region28
      $region27: #{tpu_custom_call.1} parent=5 // pred_region
        %s180 = ssub.s32 %s17, 1
        %s181 = sand.u32 %s44, 1
        %s182 = scalar_lea.sflag [#allocation3], %s181
        %s183 = sand.u32 %s44, 1
        %s184 = smul.addr %s183, 8
        %s185 = scalar_lea.vmem [#allocation2], %s184
        // Predicated region
        $region29: #{tpu_custom_call.1} parent=27 // pred_check
          %p186 = pneg %p57
        $region30: #{tpu_custom_call.1} parent=27 // pred_check_branch
          %188 = sbr.rel (%p186) target = $region32
        $region31: #{tpu_custom_call.1} parent=27 // pred_region
          %190 = dma.done %s182, 128
        $region32: #{tpu_custom_call.1} parent=27 // pred_fallthru
          _
        %s191 = sand.u32 %s72, 1
        %s192 = scalar_lea.sflag [#allocation6], %s191
        %s193 = sand.u32 %s72, 1
        %s194 = smul.addr %s193, 8
        %s195 = scalar_lea.vmem [#allocation5], %s194
        // Predicated region
        $region33: #{tpu_custom_call.1} parent=27 // pred_check
          %p196 = pneg %p85
        $region34: #{tpu_custom_call.1} parent=27 // pred_check_branch
          %198 = sbr.rel (%p196) target = $region36
        $region35: #{tpu_custom_call.1} parent=27 // pred_region
          %200 = dma.done %s192, 128
        $region36: #{tpu_custom_call.1} parent=27 // pred_fallthru
          _
        %s201 = sand.u32 %s44, 1
        %s202 = scalar_lea.sflag [#allocation3], %s201
        %s203 = sand.u32 %s44, 1
        %s204 = smul.addr %s203, 8
        %s205 = scalar_lea.vmem [#allocation2], %s204
        %p206 = pneg %p57
        %p207 = pneg %p54
        %s208 = sand.u32 %s72, 1
        %s209 = scalar_lea.sflag [#allocation6], %s208
        %s210 = sand.u32 %s72, 1
        %s211 = smul.addr %s210, 8
        %s212 = scalar_lea.vmem [#allocation5], %s211
        %p213 = pneg %p85
        %p214 = pneg %p82
        %p215 = pneg %p113
        %p216 = pneg %p110
        %s217 = sand.u32 %s100, 1
        %s218 = scalar_lea.sflag [#allocation4], %s217
        %s219 = sand.u32 %s100, 1
        %s220 = smul.addr %s219, 8
        %s221 = scalar_lea.vmem [#allocation7], %s220
        %v222 = vld [vmem:[%s185] sm:$0xff]
        %v223 = vld [vmem:[%s195] sm:$0xff]
        %v224 = vmax.f32 %v222, -0.9999999
        %v225 = vmin.f32 %v224, 0.9999999
        %v226 = vmul.f32 %v225, %v225
        %v227 = vsub.f32 1.0, %v226
        %v228 = vrsqrt.pop %v227
        %v229 = vmul.f32 %v228, %v227
        %v230 = vmul.f32 %v229, %v228
        %v231 = vmul.f32 0.5, %v230
        %v232 = vsub.f32 1.5, %v231
        %v233 = vmul.f32 %v228, %v232
        %v234 = vmul.f32 %v227, %v233
        %vm235 = vcmp.eq.f32.partialorder %v227, inf
        %v236 = vsel %vm235, %v227, %v234
        %vm237 = vcmp.eq.f32.partialorder %v227, 0.0
        %v238 = vand.u32 %v227, 2147483648
        %v239 = vsel %vm237, %v238, %v236
        %v240 = vmul.f32 %v225, 0.9800666
        %v241 = vmul.f32 %v239, 0.19866933
        %v242 = vsub.f32 %v240, %v241
        %vm243 = vcmp.gt.f32.partialorder %v225, -0.9800666
        %v244 = vsub.f32 %v225, 0.039733864
        %v245 = vsel %vm243, %v242, %v244
        %v246 = vsub.f32 %v245, %v225
        %v247 = vmul.f32 %v223, %v246
        %v248 = vadd.f32 %v225, %v247
        %v249 = vmul.f32 %v248, 30.0
        %250 = vst [vmem:[%s221] sm:$0xff] %v249
        %s251 = sand.u32 %s100, 1
        %s252 = scalar_lea.sflag [#allocation4], %s251
        %s253 = sand.u32 %s100, 1
        %s254 = smul.addr %s253, 8
        %s255 = scalar_lea.vmem [#allocation7], %s254
        // Predicated region
        $region37: #{tpu_custom_call.1} parent=27 // pred_check
          %p256 = pneg %p110
        $region38: #{tpu_custom_call.1} parent=27 // pred_check_branch
          %258 = sbr.rel (%p256) target = $region40
        $region39: #{tpu_custom_call.1} parent=27 // pred_region
          %260 = vsyncadd %s252, 0
          %s261 = smul.addr %s26, 2
          %s262 = sadd.s32 %s27, %s261
          %s263 = smul.addr %s262, 8
          %s264 = scalar_lea.hbm %s2, %s263
          %s266 = sshll.u32 %s255, 4
          %s267 = int_to_ptr.vmem [resolvable:$true] %s266
          %s268 = sshll.u32 %s264, 4
          %s269 = int_to_ptr.hbm [resolvable:$true] %s268
          %271 = dma.vmem_to_hbm [thread:$0]  %s267, 128, %s269, %s252
        $region40: #{tpu_custom_call.1} parent=27 // pred_fallthru
          _
      $region28: #{tpu_custom_call.1} parent=5 // pred_fallthru
        _
      %p272 = scmp.le.s32.totalorder 2, %s17
      // Predicated region
      $region41: #{tpu_custom_call.1} parent=5 // pred_check
        %p273 = pneg %p272
      $region42: #{tpu_custom_call.1} parent=5 // pred_check_branch
        %275 = sbr.rel (%p273) target = $region44
      $region43: #{tpu_custom_call.1} parent=5 // pred_region
        %s276 = ssub.s32 %s17, 2
        // Predicated region
        $region45: #{tpu_custom_call.1} parent=43 // pred_check
          %p277 = pneg %p116
        $region46: #{tpu_custom_call.1} parent=43 // pred_check_branch
          %279 = sbr.rel (%p277) target = $region48
        $region47: #{tpu_custom_call.1} parent=43 // pred_region
          %s280 = sand.u32 %s101, 1
          %s281 = scalar_lea.sflag [#allocation4], %s280
          %s282 = sand.u32 %s101, 1
          %s283 = smul.addr %s282, 8
          %s284 = scalar_lea.vmem [#allocation7], %s283
          %286 = dma.done %s281, 128
        $region48: #{tpu_custom_call.1} parent=43 // pred_fallthru
          _
      $region44: #{tpu_custom_call.1} parent=5 // pred_fallthru
        _
    $region6: #{tpu_custom_call.1} parent=1 // loop_footer
      %s21 = sadd.s32 1, %s17
    $region7: #{tpu_custom_call.1} parent=1 // loop_footer_branch
      %16 = sbr.rel target = $region3
    $region8: #{tpu_custom_call.1} parent=1 // loop_exit
      _
    %287 = vsyncpa [#allocation3], 1
    %s288 = scalar_lea.sflag [#allocation3], 1
    %289 = vsyncpa %s288, 1
    %290 = vsyncpa [#allocation6], 1
    %s291 = scalar_lea.sflag [#allocation6], 1
    %292 = vsyncpa %s291, 1
    %293 = vsyncpa [#allocation4], 1
    %s294 = scalar_lea.sflag [#allocation4], 1
    %295 = vsyncpa %s294, 1

</llo_original>
